<compile_context>
chip_gen: v5e
topology: v5e:2x2
jax: 0.10.0
libtpu: 0.0.40
codegen_flags: <defaults>
</compile_context>

<pallas_src>
import functools

import jax
import jax.numpy as jnp
import numpy as np
from jax.experimental import pallas as pl
from jax.experimental.pallas import tpu as pltpu


def _round_up(x, m):
    return (x + m - 1) // m * m


# ---------------------------------------------------------------------------
# Stage 1: support matmul  S[n_tile, :] = sum_d  X[n_tile, d_tile] @ W_cat[d_tile, :]
# ---------------------------------------------------------------------------
def _support_kernel(x_ref, w_ref, o_ref, acc_ref):
    d = pl.program_id(1)

    @pl.when(d == 0)
    def _():
        acc_ref[...] = jnp.zeros_like(acc_ref)

    acc_ref[...] += jnp.dot(x_ref[...], w_ref[...], preferred_element_type=jnp.float32)

    @pl.when(d == pl.num_programs(1) - 1)
    def _():
        o_ref[...] = acc_ref[...].astype(o_ref.dtype)


# ---------------------------------------------------------------------------
# Stage 2: aggregation  out[m_tile, :] = init[m_tile, :] + sum_k A_cat[m_tile, k_tile] @ S_rel[k_tile, :]
#   init = selfweight * S_self[k:k+M] + sum of all biases  (precomputed, tiny)
# ---------------------------------------------------------------------------
def _aggregate_kernel(a_ref, s_ref, init_ref, o_ref, acc_ref):
    kk = pl.program_id(1)

    @pl.when(kk == 0)
    def _():
        acc_ref[...] = init_ref[...]

    acc_ref[...] += jnp.dot(a_ref[...], s_ref[...], preferred_element_type=jnp.float32)

    @pl.when(kk == pl.num_programs(1) - 1)
    def _():
        o_ref[...] = acc_ref[...].astype(o_ref.dtype)


# ---------------------------------------------------------------------------
# MRGCN forward (share_encoder='partly') on already-encoded features
# ---------------------------------------------------------------------------
def mrgcn_partly_forward(fea_enc, adj_mats, k, weights, biases, selfweight=1.0,
                         compute_dtype=jnp.bfloat16):
    """fea_enc: (N, D); adj_mats: {rel: (M, N)}, M = N - k;
    weights: {rel or 'self': (D, F)}; biases: {rel or 'self': (F,)} or None."""
    N, D = fea_enc.shape
    M = N - k
    rel_keys = list(adj_mats.keys())
    R = len(rel_keys)
    F = weights["self"].shape[1]
    C = (R + 1) * F
    cbytes = jnp.dtype(compute_dtype).itemsize

    # ---- tile sizes (VMEM-budget aware; safe on v5e/v6e/v7x scoped VMEM) ----
    if M >= 512:
        m_tile = 256                       # fills 256x256 MXU rows; >=2 tiles keeps both v7x TCs busy
    elif M > 128:
        m_tile = 128
    else:
        m_tile = _round_up(M, 8)
    M_pad = _round_up(M, m_tile)

    blk_budget = 12 * 1024 * 1024          # double-buffered A + S blocks (stage 2)
    per_n = 2 * (m_tile * cbytes + F * cbytes)
    n2_tile = min((blk_budget // per_n) // 128 * 128, 2048, _round_up(N, 128))
    n2_tile = max(int(n2_tile), 128)       # contraction tile over N (and R*N) in stage 2
    N_pad = _round_up(N, n2_tile)
    n1_tile = 256 if N_pad % 256 == 0 else 128   # stage-1 output-row tile

    d_tile = min(512, _round_up(D, 128))
    D_pad = _round_up(D, d_tile)

    vmem_limit = 32 * 1024 * 1024

    # ---- host-side packing / padding (zero padding keeps the math exact) ----
    x_pad = jnp.pad(fea_enc.astype(compute_dtype), ((0, N_pad - N), (0, D_pad - D)))
    w_cat = jnp.concatenate([weights["self"]] + [weights[r] for r in rel_keys], axis=1)  # (D, C)
    w_pad = jnp.pad(w_cat.astype(compute_dtype), ((0, D_pad - D), (0, 0)))

    # ---- stage 1: fused support matmul  S = X @ [W_self | W_r0 | ...] ----
    s_cat = pl.pallas_call(
        _support_kernel,
        out_shape=jax.ShapeDtypeStruct((N_pad, C), compute_dtype),
        grid_spec=pltpu.PrefetchScalarGridSpec(
            num_scalar_prefetch=0,
            grid=(N_pad // n1_tile, D_pad // d_tile),
            in_specs=[
                pl.BlockSpec((n1_tile, d_tile), lambda n, d: (n, d)),   # X
                pl.BlockSpec((d_tile, C), lambda n, d: (d, 0)),         # W_cat
            ],
            out_specs=pl.BlockSpec((n1_tile, C), lambda n, d: (n, 0)),
            scratch_shapes=[pltpu.VMEM((n1_tile, C), jnp.float32)],
        ),
        compiler_params=pltpu.CompilerParams(
            dimension_semantics=("parallel", "arbitrary"),
            vmem_limit_bytes=vmem_limit,
        ),
    )(x_pad, w_pad)

    # all biases collapse into one add
    b_total = jnp.zeros((F,), jnp.float32)
    for key in ["self"] + rel_keys:
        if biases is not None and biases.get(key) is not None:
            b_total = b_total + biases[key].astype(jnp.float32)

    # self term: selfweight * (X[k:] @ W_self) == selfweight * S[k:k+M, :F]  (no eye() adjacency)
    init = selfweight * s_cat[k:k + M, :F].astype(jnp.float32) + b_total[None, :]
    if R == 0:
        return init
    init_pad = jnp.pad(init, ((0, M_pad - M), (0, 0)))

    # adjacency stacked as (M, R*N): relation sum becomes a single contraction axis
    a_stack = jnp.stack([adj_mats[r].astype(compute_dtype) for r in rel_keys], axis=1)   # (M, R, N)
    a_cat = jnp.pad(a_stack, ((0, M_pad - M), (0, 0), (0, N_pad - N))).reshape(M_pad, R * N_pad)

    # per-relation supports laid out to match a_cat's (r, n) column order
    s_rel = s_cat[:, F:].reshape(N_pad, R, F).transpose(1, 0, 2).reshape(R * N_pad, F)

    # ---- stage 2: graph aggregation ----
    # TODO(synk): F (out_dim) is lane-sparse (< 128); padding F or transposing the
    #             accumulator is a secondary win left out for clarity.
    K = R * N_pad
    out = pl.pallas_call(
        _aggregate_kernel,
        out_shape=jax.ShapeDtypeStruct((M_pad, F), jnp.float32),
        grid_spec=pltpu.PrefetchScalarGridSpec(
            num_scalar_prefetch=0,
            grid=(M_pad // m_tile, K // n2_tile),
            in_specs=[
                pl.BlockSpec((m_tile, n2_tile), lambda m, kk: (m, kk)),   # A_cat
                pl.BlockSpec((n2_tile, F), lambda m, kk: (kk, 0)),        # S_rel
                pl.BlockSpec((m_tile, F), lambda m, kk: (m, 0)),          # init (self + biases)
            ],
            out_specs=pl.BlockSpec((m_tile, F), lambda m, kk: (m, 0)),
            scratch_shapes=[pltpu.VMEM((m_tile, F), jnp.float32)],
        ),
        compiler_params=pltpu.CompilerParams(
            dimension_semantics=("parallel", "arbitrary"),
            vmem_limit_bytes=vmem_limit,
        ),
    )(a_cat, s_rel, init_pad)
    return out[:M]


@functools.partial(jax.jit, static_argnames=("k", "selfweight", "out_dim", "compute_dtype"))
def single_layer_image_gcn_forward(fea_enc, adj_mats, weights, biases, *,
                                   k, selfweight=1.0, out_dim=None,
                                   compute_dtype=jnp.bfloat16):
    """Equivalent of SingleLayerImageGCN.forward (encoder output given as fea_enc)."""
    fea2 = mrgcn_partly_forward(fea_enc, adj_mats, k, weights, biases,
                                selfweight=selfweight, compute_dtype=compute_dtype)
    out_dim = out_dim if out_dim is not None else fea2.shape[-1]
    return fea2.reshape(-1, out_dim)                  # fea2.view(-1, out_dim)


# ---------------------------------------------------------------------------
if __name__ == "__main__":
    key = jax.random.PRNGKey(0)
    ks = jax.random.split(key, 9)

    relations = ["r0", "r1"]
    N, k_split = 32, 8          # 32 nodes, first 8 are input-only
    M = N - k_split             # 24 output nodes
    D = 256                     # encoder feature dim (in_dim)
    F_out = 16                  # out_dim

    # encoder(images).squeeze()  (see TODO above)
    fea_enc = jax.random.normal(ks[0], (N, D), jnp.float32)

    adj_mats = {
        "r0": (jax.random.uniform(ks[1], (M, N)) > 0.6).astype(jnp.float32),
        "r1": (jax.random.uniform(ks[2], (M, N)) > 0.6).astype(jnp.float32),
    }
    weights = {
        "self": 0.1 * jax.random.normal(ks[3], (D, F_out), jnp.float32),
        "r0":   0.1 * jax.random.normal(ks[4], (D, F_out), jnp.float32),
        "r1":   0.1 * jax.random.normal(ks[5], (D, F_out), jnp.float32),
    }
    biases = {
        "self": 0.1 * jax.random.normal(ks[6], (F_out,), jnp.float32),
        "r0":   0.1 * jax.random.normal(ks[7], (F_out,), jnp.float32),
        "r1":   0.1 * jax.random.normal(ks[8], (F_out,), jnp.float32),
    }

    out = single_layer_image_gcn_forward(fea_enc, adj_mats, weights, biases,
                                         k=k_split, selfweight=1.0, out_dim=F_out)
    out = jax.block_until_ready(out)

    # float64 numpy reference of the torch forward (share_encoder='partly'),
    # evaluated on the same bf16-quantized inputs the kernel consumes.
    cd = jnp.bfloat16
    xq = np.asarray(fea_enc.astype(cd).astype(jnp.float32), np.float64)
    wq = {kk: np.asarray(v.astype(cd).astype(jnp.float32), np.float64) for kk, v in weights.items()}
    aq = {kk: np.asarray(v.astype(cd).astype(jnp.float32), np.float64) for kk, v in adj_mats.items()}
    ref = 1.0 * (xq[k_split:] @ wq["self"]) + np.asarray(biases["self"], np.float64)
    for r in relations:
        ref = ref + aq[r] @ (xq @ wq[r]) + np.asarray(biases[r], np.float64)
    ref = ref.reshape(-1, F_out)

    np.testing.assert_allclose(np.asarray(out), ref, rtol=5e-2, atol=5e-2)
    print("KERNEL_OK")
</pallas_src>

<mosaic_0001>
module attributes {stable_mosaic.version = 11 : i64} {
  func.func @_support_kernel(%arg0: i32, %arg1: i32, %arg2: memref<128x256xbf16, #tpu.memory_space<vmem>>, %arg3: memref<256x48xbf16, #tpu.memory_space<vmem>>, %arg4: memref<128x48xbf16, #tpu.memory_space<vmem>>, %arg5: memref<128x48xf32, #tpu.memory_space<vmem>>) attributes {dimension_semantics = [#tpu.dimension_semantics<parallel>, #tpu.dimension_semantics<arbitrary>], iteration_bounds = array<i64: 1, 1>, scalar_prefetch = 0 : i64, scratch_operands = 1 : i64, tpu.core_type = #tpu.core_type<tc>, window_params = [{transform_indices = @transform_0, window_bounds = array<i64: 128, 256>}, {transform_indices = @transform_1, window_bounds = array<i64: 256, 48>}, {transform_indices = @transform_2, window_bounds = array<i64: 128, 48>}]} {
    %c0_i32 = arith.constant 0 : i32
    %0 = arith.cmpi eq, %arg1, %c0_i32 : i32
    %1 = arith.extui %0 : i1 to i32
    %c0_i32_0 = arith.constant 0 : i32
    %2 = arith.cmpi ne, %1, %c0_i32_0 : i32
    scf.if %2 {
      %cst_10 = arith.constant 0.000000e+00 : f32
      %12 = vector.broadcast %cst_10 : f32 to vector<128x48xf32>
      %c0_11 = arith.constant 0 : index
      %c0_12 = arith.constant 0 : index
      %13 = vector.load %arg5[%c0_11, %c0_12] : memref<128x48xf32, #tpu.memory_space<vmem>>, vector<128x48xf32>
      tpu.vector_store %arg5[%c0_11, %c0_12], %12 {strides = array<i32>} : memref<128x48xf32, #tpu.memory_space<vmem>>, vector<128x48xf32>,
    } else {
    }
    %c0 = arith.constant 0 : index
    %c0_1 = arith.constant 0 : index
    %3 = vector.load %arg5[%c0, %c0_1] : memref<128x48xf32, #tpu.memory_space<vmem>>, vector<128x48xf32>
    %c0_2 = arith.constant 0 : index
    %c0_3 = arith.constant 0 : index
    %4 = vector.load %arg2[%c0_2, %c0_3] : memref<128x256xbf16, #tpu.memory_space<vmem>>, vector<128x256xbf16>
    %c0_4 = arith.constant 0 : index
    %c0_5 = arith.constant 0 : index
    %5 = vector.load %arg3[%c0_4, %c0_5] : memref<256x48xbf16, #tpu.memory_space<vmem>>, vector<256x48xbf16>
    %cst = arith.constant dense<0.000000e+00> : vector<128x48xf32>
    %6 = tpu.matmul %4, %5, %cst {dimension_numbers = #tpu.dot_dimension_numbers<[1], [0], [0], [1], [0, 0, 1, 1], [], []>} : vector<128x256xbf16>, vector<256x48xbf16>, vector<128x48xf32> -> vector<128x48xf32>
    %7 = arith.addf %3, %6 : vector<128x48xf32>
    %c0_6 = arith.constant 0 : index
    %c0_7 = arith.constant 0 : index
    %8 = vector.load %arg5[%c0_6, %c0_7] : memref<128x48xf32, #tpu.memory_space<vmem>>, vector<128x48xf32>
    tpu.vector_store %arg5[%c0_6, %c0_7], %7 {strides = array<i32>} : memref<128x48xf32, #tpu.memory_space<vmem>>, vector<128x48xf32>,
    %c0_i32_8 = arith.constant 0 : i32
    %9 = arith.cmpi eq, %arg1, %c0_i32_8 : i32
    %10 = arith.extui %9 : i1 to i32
    %c0_i32_9 = arith.constant 0 : i32
    %11 = arith.cmpi ne, %10, %c0_i32_9 : i32
    scf.if %11 {
      %c0_10 = arith.constant 0 : index
      %c0_11 = arith.constant 0 : index
      %12 = vector.load %arg5[%c0_10, %c0_11] : memref<128x48xf32, #tpu.memory_space<vmem>>, vector<128x48xf32>
      %13 = arith.truncf %12 : vector<128x48xf32> to vector<128x48xbf16>
      %c0_12 = arith.constant 0 : index
      %c0_13 = arith.constant 0 : index
      %14 = vector.load %arg4[%c0_12, %c0_13] : memref<128x48xbf16, #tpu.memory_space<vmem>>, vector<128x48xbf16>
      tpu.vector_store %arg4[%c0_12, %c0_13], %13 {strides = array<i32>} : memref<128x48xbf16, #tpu.memory_space<vmem>>, vector<128x48xbf16>,
    } else {
    }
    return
  }
  func.func @transform_0(%arg0: i32, %arg1: i32) -> (i32, i32) {
    %c0_i32 = arith.constant 0 : i32
    return %arg0, %arg1 : i32, i32
  }
  func.func @transform_1(%arg0: i32, %arg1: i32) -> (i32, i32) {
    %c0_i32 = arith.constant 0 : i32
    %c0_i32_0 = arith.constant 0 : i32
    return %arg1, %c0_i32 : i32, i32
  }
  func.func @transform_2(%arg0: i32, %arg1: i32) -> (i32, i32) {
    %c0_i32 = arith.constant 0 : i32
    %c0_i32_0 = arith.constant 0 : i32
    return %arg0, %c0_i32 : i32, i32
  }
}

module attributes {stable_mosaic.version = 11 : i64} {
  func.func @_aggregate_kernel(%arg0: i32, %arg1: i32, %arg2: memref<24x128xbf16, #tpu.memory_space<vmem>>, %arg3: memref<128x16xbf16, #tpu.memory_space<vmem>>, %arg4: memref<24x16xf32, #tpu.memory_space<vmem>>, %arg5: memref<24x16xf32, #tpu.memory_space<vmem>>, %arg6: memref<24x16xf32, #tpu.memory_space<vmem>>) attributes {dimension_semantics = [#tpu.dimension_semantics<parallel>, #tpu.dimension_semantics<arbitrary>], iteration_bounds = array<i64: 1, 2>, scalar_prefetch = 0 : i64, scratch_operands = 1 : i64, tpu.core_type = #tpu.core_type<tc>, window_params = [{transform_indices = @transform_0, window_bounds = array<i64: 24, 128>}, {transform_indices = @transform_1, window_bounds = array<i64: 128, 16>}, {transform_indices = @transform_2, window_bounds = array<i64: 24, 16>}, {transform_indices = @transform_3, window_bounds = array<i64: 24, 16>}]} {
    %c0_i32 = arith.constant 0 : i32
    %0 = arith.cmpi eq, %arg1, %c0_i32 : i32
    %1 = arith.extui %0 : i1 to i32
    %c0_i32_0 = arith.constant 0 : i32
    %2 = arith.cmpi ne, %1, %c0_i32_0 : i32
    scf.if %2 {
      %c0_9 = arith.constant 0 : index
      %c0_10 = arith.constant 0 : index
      %12 = vector.load %arg4[%c0_9, %c0_10] : memref<24x16xf32, #tpu.memory_space<vmem>>, vector<24x16xf32>
      %c0_11 = arith.constant 0 : index
      %c0_12 = arith.constant 0 : index
      %13 = vector.load %arg6[%c0_11, %c0_12] : memref<24x16xf32, #tpu.memory_space<vmem>>, vector<24x16xf32>
      tpu.vector_store %arg6[%c0_11, %c0_12], %12 {strides = array<i32>} : memref<24x16xf32, #tpu.memory_space<vmem>>, vector<24x16xf32>,
    } else {
    }
    %c0 = arith.constant 0 : index
    %c0_1 = arith.constant 0 : index
    %3 = vector.load %arg6[%c0, %c0_1] : memref<24x16xf32, #tpu.memory_space<vmem>>, vector<24x16xf32>
    %c0_2 = arith.constant 0 : index
    %c0_3 = arith.constant 0 : index
    %4 = vector.load %arg2[%c0_2, %c0_3] : memref<24x128xbf16, #tpu.memory_space<vmem>>, vector<24x128xbf16>
    %c0_4 = arith.constant 0 : index
    %c0_5 = arith.constant 0 : index
    %5 = vector.load %arg3[%c0_4, %c0_5] : memref<128x16xbf16, #tpu.memory_space<vmem>>, vector<128x16xbf16>
    %cst = arith.constant dense<0.000000e+00> : vector<24x16xf32>
    %6 = tpu.matmul %4, %5, %cst {dimension_numbers = #tpu.dot_dimension_numbers<[1], [0], [0], [1], [0, 0, 1, 1], [], []>} : vector<24x128xbf16>, vector<128x16xbf16>, vector<24x16xf32> -> vector<24x16xf32>
    %7 = arith.addf %3, %6 : vector<24x16xf32>
    %c0_6 = arith.constant 0 : index
    %c0_7 = arith.constant 0 : index
    %8 = vector.load %arg6[%c0_6, %c0_7] : memref<24x16xf32, #tpu.memory_space<vmem>>, vector<24x16xf32>
    tpu.vector_store %arg6[%c0_6, %c0_7], %7 {strides = array<i32>} : memref<24x16xf32, #tpu.memory_space<vmem>>, vector<24x16xf32>,
    %c1_i32 = arith.constant 1 : i32
    %9 = arith.cmpi eq, %arg1, %c1_i32 : i32
    %10 = arith.extui %9 : i1 to i32
    %c0_i32_8 = arith.constant 0 : i32
    %11 = arith.cmpi ne, %10, %c0_i32_8 : i32
    scf.if %11 {
      %c0_9 = arith.constant 0 : index
      %c0_10 = arith.constant 0 : index
      %12 = vector.load %arg6[%c0_9, %c0_10] : memref<24x16xf32, #tpu.memory_space<vmem>>, vector<24x16xf32>
      %c0_11 = arith.constant 0 : index
      %c0_12 = arith.constant 0 : index
      %13 = vector.load %arg5[%c0_11, %c0_12] : memref<24x16xf32, #tpu.memory_space<vmem>>, vector<24x16xf32>
      tpu.vector_store %arg5[%c0_11, %c0_12], %12 {strides = array<i32>} : memref<24x16xf32, #tpu.memory_space<vmem>>, vector<24x16xf32>,
    } else {
    }
    return
  }
  func.func @transform_0(%arg0: i32, %arg1: i32) -> (i32, i32) {
    %c0_i32 = arith.constant 0 : i32
    return %arg0, %arg1 : i32, i32
  }
  func.func @transform_1(%arg0: i32, %arg1: i32) -> (i32, i32) {
    %c0_i32 = arith.constant 0 : i32
    %c0_i32_0 = arith.constant 0 : i32
    return %arg1, %c0_i32 : i32, i32
  }
  func.func @transform_2(%arg0: i32, %arg1: i32) -> (i32, i32) {
    %c0_i32 = arith.constant 0 : i32
    %c0_i32_0 = arith.constant 0 : i32
    return %arg0, %c0_i32 : i32, i32
  }
  func.func @transform_3(%arg0: i32, %arg1: i32) -> (i32, i32) {
    %c0_i32 = arith.constant 0 : i32
    %c0_i32_0 = arith.constant 0 : i32
    return %arg0, %c0_i32 : i32, i32
  }
}

</mosaic_0001>

<llo_original>
// kernel: single_layer_image_gcn_forward.2
$region0: #{single_layer_image_gcn_forward.2}
  #allocation0 [shape = 'u32[]', space=smem, size = 0x4, offset = 0x4, fixed_abs, tag = 'smem constant byte address 0x4 - core index']
  #allocation1 [shape = 'u32[72,128]{1,0:T(1,128)}', space=vmem, size = 0x9000, scoped, tag = 'internal scratch']
  #allocation2 [shape = 'f32[128,48]{1,0:T(8,128)}', space=vmem, size = 0x10000, scoped, tag = 'scratch operand']
  %s0 = inlined_call_operand.vmem [shape: bf16[128,256], index: 0, kind: input, shape index: {}]
  %s1 = inlined_call_operand.vmem [shape: bf16[256,48], index: 1, kind: input, shape index: {}]
  %s2 = inlined_call_operand.vmem [shape: bf16[128,48], index: 2, kind: output, shape index: {}]
  %s3 = sld [smem:[#allocation0]]
  $region26: #{single_layer_image_gcn_forward.2} parent=0
    _
  %s5 = ssub.s32 1, %s3
  %s6 = scalar_select 0, %s5, %s3
  // Predicated region
  $region2: #{single_layer_image_gcn_forward.2} parent=0 // pred_check
    _
  $region3: #{single_layer_image_gcn_forward.2} parent=0 // pred_check_branch
    %8 = sbr.rel (0) target = $region5
  $region4: #{single_layer_image_gcn_forward.2} parent=0 // pred_region
    _
  $region5: #{single_layer_image_gcn_forward.2} parent=0 // pred_fallthru
    _
  // Predicated region
  $region6: #{single_layer_image_gcn_forward.2} parent=0 // pred_check
    _
  $region7: #{single_layer_image_gcn_forward.2} parent=0 // pred_check_branch
    %10 = sbr.rel (0) target = $region9
  $region8: #{single_layer_image_gcn_forward.2} parent=0 // pred_region
    _
  $region9: #{single_layer_image_gcn_forward.2} parent=0 // pred_fallthru
    _
  %p11 = scmp.eq.s32.totalorder 0, 0
  // Predicated region
  $region10: #{single_layer_image_gcn_forward.2} parent=0 // pred_check
    %p12 = pneg %p11
  $region11: #{single_layer_image_gcn_forward.2} parent=0 // pred_check_branch
    %14 = sbr.rel (%p12) target = $region13
  $region12: #{single_layer_image_gcn_forward.2} parent=0 // pred_region
    %vm15 = vcmask 392192
    %16 = vst.msk [vmem:[#allocation2] sm:$0xff] %vm15, 0.0
    %17 = vst.msk [vmem:[#allocation2 + $0x8] sm:$0xff] %vm15, 0.0
    %18 = vst.msk [vmem:[#allocation2 + $0x10] sm:$0xff] %vm15, 0.0
    %19 = vst.msk [vmem:[#allocation2 + $0x18] sm:$0xff] %vm15, 0.0
    %20 = vst.msk [vmem:[#allocation2 + $0x20] sm:$0xff] %vm15, 0.0
    %21 = vst.msk [vmem:[#allocation2 + $0x28] sm:$0xff] %vm15, 0.0
    %22 = vst.msk [vmem:[#allocation2 + $0x30] sm:$0xff] %vm15, 0.0
    %23 = vst.msk [vmem:[#allocation2 + $0x38] sm:$0xff] %vm15, 0.0
    %24 = vst.msk [vmem:[#allocation2 + $0x40] sm:$0xff] %vm15, 0.0
    %25 = vst.msk [vmem:[#allocation2 + $0x48] sm:$0xff] %vm15, 0.0
    %26 = vst.msk [vmem:[#allocation2 + $0x50] sm:$0xff] %vm15, 0.0
    %27 = vst.msk [vmem:[#allocation2 + $0x58] sm:$0xff] %vm15, 0.0
    %28 = vst.msk [vmem:[#allocation2 + $0x60] sm:$0xff] %vm15, 0.0
    %29 = vst.msk [vmem:[#allocation2 + $0x68] sm:$0xff] %vm15, 0.0
    %30 = vst.msk [vmem:[#allocation2 + $0x70] sm:$0xff] %vm15, 0.0
    %31 = vst.msk [vmem:[#allocation2 + $0x78] sm:$0xff] %vm15, 0.0
  $region13: #{single_layer_image_gcn_forward.2} parent=0 // pred_fallthru
    _
  %v32 = vld [vmem:[#allocation2] sm:$0xff]
  %v33 = vld [vmem:[#allocation2 + $0x8] sm:$0xff]
  %v34 = vld [vmem:[#allocation2 + $0x10] sm:$0xff]
  %v35 = vld [vmem:[#allocation2 + $0x18] sm:$0xff]
  %v36 = vld [vmem:[#allocation2 + $0x20] sm:$0xff]
  %v37 = vld [vmem:[#allocation2 + $0x28] sm:$0xff]
  %v38 = vld [vmem:[#allocation2 + $0x30] sm:$0xff]
  %v39 = vld [vmem:[#allocation2 + $0x38] sm:$0xff]
  %v40 = vld [vmem:[#allocation2 + $0x40] sm:$0xff]
  %v41 = vld [vmem:[#allocation2 + $0x48] sm:$0xff]
  %v42 = vld [vmem:[#allocation2 + $0x50] sm:$0xff]
  %v43 = vld [vmem:[#allocation2 + $0x58] sm:$0xff]
  %v44 = vld [vmem:[#allocation2 + $0x60] sm:$0xff]
  %v45 = vld [vmem:[#allocation2 + $0x68] sm:$0xff]
  %v46 = vld [vmem:[#allocation2 + $0x70] sm:$0xff]
  %v47 = vld [vmem:[#allocation2 + $0x78] sm:$0xff]
  %v48 = vld [vmem:[%s0] sm:$0xff]
  %v49 = vld [vmem:[%s0 + $0x8] sm:$0xff]
  %v50 = vld [vmem:[%s0 + $0x10] sm:$0xff]
  %v51 = vld [vmem:[%s0 + $0x18] sm:$0xff]
  %v52 = vld [vmem:[%s0 + $0x20] sm:$0xff]
  %v53 = vld [vmem:[%s0 + $0x28] sm:$0xff]
  %v54 = vld [vmem:[%s0 + $0x30] sm:$0xff]
  %v55 = vld [vmem:[%s0 + $0x38] sm:$0xff]
  %v56 = vld [vmem:[%s0 + $0x40] sm:$0xff]
  %v57 = vld [vmem:[%s0 + $0x48] sm:$0xff]
  %v58 = vld [vmem:[%s0 + $0x50] sm:$0xff]
  %v59 = vld [vmem:[%s0 + $0x58] sm:$0xff]
  %v60 = vld [vmem:[%s0 + $0x60] sm:$0xff]
  %v61 = vld [vmem:[%s0 + $0x68] sm:$0xff]
  %v62 = vld [vmem:[%s0 + $0x70] sm:$0xff]
  %v63 = vld [vmem:[%s0 + $0x78] sm:$0xff]
  %v64 = vld [vmem:[%s1] sm:$0xf]
  %v65 = vld [vmem:[%s1 + $0x4] sm:$0xf]
  %v66 = vld [vmem:[%s1 + $0x8] sm:$0xf]
  %v67 = vld [vmem:[%s1 + $0xc] sm:$0xf]
  %v68 = vld [vmem:[%s1 + $0x10] sm:$0xf]
  %v69 = vld [vmem:[%s1 + $0x14] sm:$0xf]
  %v70 = vld [vmem:[%s1 + $0x18] sm:$0xf]
  %v71 = vld [vmem:[%s1 + $0x1c] sm:$0xf]
  %v72 = vld [vmem:[%s1 + $0x20] sm:$0xf]
  %v73 = vld [vmem:[%s1 + $0x24] sm:$0xf]
  %v74 = vld [vmem:[%s1 + $0x28] sm:$0xf]
  %v75 = vld [vmem:[%s1 + $0x2c] sm:$0xf]
  %v76 = vld [vmem:[%s1 + $0x30] sm:$0xf]
  %v77 = vld [vmem:[%s1 + $0x34] sm:$0xf]
  %v78 = vld [vmem:[%s1 + $0x38] sm:$0xf]
  %v79 = vld [vmem:[%s1 + $0x3c] sm:$0xf]
  %v80 = vld [vmem:[%s1 + $0x40] sm:$0xf]
  %v81 = vld [vmem:[%s1 + $0x44] sm:$0xf]
  %v82 = vld [vmem:[%s1 + $0x48] sm:$0xf]
  %v83 = vld [vmem:[%s1 + $0x4c] sm:$0xf]
  %v84 = vld [vmem:[%s1 + $0x50] sm:$0xf]
  %v85 = vld [vmem:[%s1 + $0x54] sm:$0xf]
  %v86 = vld [vmem:[%s1 + $0x58] sm:$0xf]
  %v87 = vld [vmem:[%s1 + $0x5c] sm:$0xf]
  %v88 = vld [vmem:[%s1 + $0x60] sm:$0xf]
  %v89 = vld [vmem:[%s1 + $0x64] sm:$0xf]
  %v90 = vld [vmem:[%s1 + $0x68] sm:$0xf]
  %v91 = vld [vmem:[%s1 + $0x6c] sm:$0xf]
  %v92 = vld [vmem:[%s1 + $0x70] sm:$0xf]
  %v93 = vld [vmem:[%s1 + $0x74] sm:$0xf]
  %v94 = vld [vmem:[%s1 + $0x78] sm:$0xf]
  %v95 = vld [vmem:[%s1 + $0x7c] sm:$0xf]
  %v112 = vunpack.c.l.b16 %v48
  %v113 = vunpack.c.h.b16 %v48
  %v114 = vunpack.c.l.b16 %v49
  %v115 = vunpack.c.h.b16 %v49
  %v116 = vunpack.c.l.b16 %v50
  %v117 = vunpack.c.h.b16 %v50
  %v118 = vunpack.c.l.b16 %v51
  %v119 = vunpack.c.h.b16 %v51
  %v120 = vunpack.c.l.b16 %v52
  %v121 = vunpack.c.h.b16 %v52
  %v122 = vunpack.c.l.b16 %v53
  %v123 = vunpack.c.h.b16 %v53
  %v124 = vunpack.c.l.b16 %v54
  %v125 = vunpack.c.h.b16 %v54
  %v126 = vunpack.c.l.b16 %v55
  %v127 = vunpack.c.h.b16 %v55
  %v128 = vunpack.c.l.b16 %v56
  %v129 = vunpack.c.h.b16 %v56
  %v130 = vunpack.c.l.b16 %v57
  %v131 = vunpack.c.h.b16 %v57
  %v132 = vunpack.c.l.b16 %v58
  %v133 = vunpack.c.h.b16 %v58
  %v134 = vunpack.c.l.b16 %v59
  %v135 = vunpack.c.h.b16 %v59
  %v136 = vunpack.c.l.b16 %v60
  %v137 = vunpack.c.h.b16 %v60
  %v138 = vunpack.c.l.b16 %v61
  %v139 = vunpack.c.h.b16 %v61
  %v140 = vunpack.c.l.b16 %v62
  %v141 = vunpack.c.h.b16 %v62
  %v142 = vunpack.c.l.b16 %v63
  %v143 = vunpack.c.h.b16 %v63
  %v144 = vpack.c.b16 %v114, %v112
  %v145 = vpack.c.b16 %v115, %v113
  %v146 = vpack.c.b16 %v118, %v116
  %v147 = vpack.c.b16 %v119, %v117
  %v148 = vpack.c.b16 %v122, %v120
  %v149 = vpack.c.b16 %v123, %v121
  %v150 = vpack.c.b16 %v126, %v124
  %v151 = vpack.c.b16 %v127, %v125
  %v152 = vpack.c.b16 %v130, %v128
  %v153 = vpack.c.b16 %v131, %v129
  %v154 = vpack.c.b16 %v134, %v132
  %v155 = vpack.c.b16 %v135, %v133
  %v156 = vpack.c.b16 %v138, %v136
  %v157 = vpack.c.b16 %v139, %v137
  %v158 = vpack.c.b16 %v142, %v140
  %v159 = vpack.c.b16 %v143, %v141
  %v208 = vunpack.c.l.b16 %v64
  %v209 = vunpack.c.l.b16 %v65
  %v210 = vunpack.c.l.b16 %v66
  %v211 = vunpack.c.l.b16 %v67
  %v212 = vunpack.c.l.b16 %v68
  %v213 = vunpack.c.l.b16 %v69
  %v214 = vunpack.c.l.b16 %v70
  %v215 = vunpack.c.l.b16 %v71
  %v216 = vunpack.c.l.b16 %v72
  %v217 = vunpack.c.l.b16 %v73
  %v218 = vunpack.c.l.b16 %v74
  %v219 = vunpack.c.l.b16 %v75
  %v220 = vunpack.c.l.b16 %v76
  %v221 = vunpack.c.l.b16 %v77
  %v222 = vunpack.c.l.b16 %v78
  %v223 = vunpack.c.l.b16 %v79
  %v224 = vunpack.c.l.b16 %v80
  %v225 = vunpack.c.l.b16 %v81
  %v226 = vunpack.c.l.b16 %v82
  %v227 = vunpack.c.l.b16 %v83
  %v228 = vunpack.c.l.b16 %v84
  %v229 = vunpack.c.l.b16 %v85
  %v230 = vunpack.c.l.b16 %v86
  %v231 = vunpack.c.l.b16 %v87
  %v232 = vunpack.c.l.b16 %v88
  %v233 = vunpack.c.l.b16 %v89
  %v234 = vunpack.c.l.b16 %v90
  %v235 = vunpack.c.l.b16 %v91
  %v236 = vunpack.c.l.b16 %v92
  %v237 = vunpack.c.l.b16 %v93
  %v238 = vunpack.c.l.b16 %v94
  %v239 = vunpack.c.l.b16 %v95
  %v240 = vpack.c.b16 %v209, %v208
  %v241 = vpack.c.b16 %v211, %v210
  %v242 = vpack.c.b16 %v213, %v212
  %v243 = vpack.c.b16 %v215, %v214
  %v244 = vpack.c.b16 %v217, %v216
  %v245 = vpack.c.b16 %v219, %v218
  %v246 = vpack.c.b16 %v221, %v220
  %v247 = vpack.c.b16 %v223, %v222
  %v248 = vpack.c.b16 %v225, %v224
  %v249 = vpack.c.b16 %v227, %v226
  %v250 = vpack.c.b16 %v229, %v228
  %v251 = vpack.c.b16 %v231, %v230
  %v252 = vpack.c.b16 %v233, %v232
  %v253 = vpack.c.b16 %v235, %v234
  %v254 = vpack.c.b16 %v237, %v236
  %v255 = vpack.c.b16 %v239, %v238
  %272 = vmatpush.bf16.msra.mxu0 %v247
  %273 = vmatpush.bf16.msra.mxu0 %v246
  %274 = vmatpush.bf16.msra.mxu0 %v245
  %275 = vmatpush.bf16.msra.mxu0 %v244
  %276 = vmatpush.bf16.msra.mxu0 %v243
  %277 = vmatpush.bf16.msra.mxu0 %v242
  %278 = vmatpush.bf16.msra.mxu0 %v241
  %279 = vmatpush.bf16.msra.mxu0 %v240
  %280 = vmatmul.bf16.gmra.mxu0 %v144
  %v281 = vpop.f32.mrf.mxu0
  %v282 = vadd.f32 0.0, %v281
  %v283 = vpop.f32.mrf.mxu0
  %v284 = vadd.f32 0.0, %v283
  %285 = vmatmul.bf16.gmra.mxu0 %v146
  %v286 = vpop.f32.mrf.mxu0
  %v287 = vadd.f32 0.0, %v286
  %v288 = vpop.f32.mrf.mxu0
  %v289 = vadd.f32 0.0, %v288
  %290 = vmatmul.bf16.gmra.mxu0 %v148
  %v291 = vpop.f32.mrf.mxu0
  %v292 = vadd.f32 0.0, %v291
  %v293 = vpop.f32.mrf.mxu0
  %v294 = vadd.f32 0.0, %v293
  %295 = vmatmul.bf16.gmra.mxu0 %v150
  %v296 = vpop.f32.mrf.mxu0
  %v297 = vadd.f32 0.0, %v296
  %v298 = vpop.f32.mrf.mxu0
  %v299 = vadd.f32 0.0, %v298
  %300 = vmatmul.bf16.gmra.mxu0 %v152
  %v301 = vpop.f32.mrf.mxu0
  %v302 = vadd.f32 0.0, %v301
  %v303 = vpop.f32.mrf.mxu0
  %v304 = vadd.f32 0.0, %v303
  %305 = vmatmul.bf16.gmra.mxu0 %v154
  %v306 = vpop.f32.mrf.mxu0
  %v307 = vadd.f32 0.0, %v306
  %v308 = vpop.f32.mrf.mxu0
  %v309 = vadd.f32 0.0, %v308
  %310 = vmatmul.bf16.gmra.mxu0 %v156
  %v311 = vpop.f32.mrf.mxu0
  %v312 = vadd.f32 0.0, %v311
  %v313 = vpop.f32.mrf.mxu0
  %v314 = vadd.f32 0.0, %v313
  %315 = vmatmul.bf16.gmra.mxu0 %v158
  %v316 = vpop.f32.mrf.mxu0
  %v317 = vadd.f32 0.0, %v316
  %v318 = vpop.f32.mrf.mxu0
  %v319 = vadd.f32 0.0, %v318
  %320 = vdwg.mxu0
  %321 = vmatpush.bf16.msra.mxu0 %v255
  %322 = vmatpush.bf16.msra.mxu0 %v254
  %323 = vmatpush.bf16.msra.mxu0 %v253
  %324 = vmatpush.bf16.msra.mxu0 %v252
  %325 = vmatpush.bf16.msra.mxu0 %v251
  %326 = vmatpush.bf16.msra.mxu0 %v250
  %327 = vmatpush.bf16.msra.mxu0 %v249
  %328 = vmatpush.bf16.msra.mxu0 %v248
  %329 = vmatmul.bf16.gmra.mxu0 %v145
  %v330 = vpop.f32.mrf.mxu0
  %v331 = vadd.f32 %v282, %v330
  %v332 = vpop.f32.mrf.mxu0
  %v333 = vadd.f32 %v284, %v332
  %334 = vmatmul.bf16.gmra.mxu0 %v147
  %v335 = vpop.f32.mrf.mxu0
  %v336 = vadd.f32 %v287, %v335
  %v337 = vpop.f32.mrf.mxu0
  %v338 = vadd.f32 %v289, %v337
  %339 = vmatmul.bf16.gmra.mxu0 %v149
  %v340 = vpop.f32.mrf.mxu0
  %v341 = vadd.f32 %v292, %v340
  %v342 = vpop.f32.mrf.mxu0
  %v343 = vadd.f32 %v294, %v342
  %344 = vmatmul.bf16.gmra.mxu0 %v151
  %v345 = vpop.f32.mrf.mxu0
  %v346 = vadd.f32 %v297, %v345
  %v347 = vpop.f32.mrf.mxu0
  %v348 = vadd.f32 %v299, %v347
  %349 = vmatmul.bf16.gmra.mxu0 %v153
  %v350 = vpop.f32.mrf.mxu0
  %v351 = vadd.f32 %v302, %v350
  %v352 = vpop.f32.mrf.mxu0
  %v353 = vadd.f32 %v304, %v352
  %354 = vmatmul.bf16.gmra.mxu0 %v155
  %v355 = vpop.f32.mrf.mxu0
  %v356 = vadd.f32 %v307, %v355
  %v357 = vpop.f32.mrf.mxu0
  %v358 = vadd.f32 %v309, %v357
  %359 = vmatmul.bf16.gmra.mxu0 %v157
  %v360 = vpop.f32.mrf.mxu0
  %v361 = vadd.f32 %v312, %v360
  %v362 = vpop.f32.mrf.mxu0
  %v363 = vadd.f32 %v314, %v362
  %364 = vmatmul.bf16.gmra.mxu0 %v159
  %v365 = vpop.f32.mrf.mxu0
  %v366 = vadd.f32 %v317, %v365
  %v367 = vpop.f32.mrf.mxu0
  %v368 = vadd.f32 %v319, %v367
  %369 = vdwg.mxu0
  %v370 = vadd.f32 %v32, %v331
  %v371 = vadd.f32 %v33, %v333
  %v372 = vadd.f32 %v34, %v336
  %v373 = vadd.f32 %v35, %v338
  %v374 = vadd.f32 %v36, %v341
  %v375 = vadd.f32 %v37, %v343
  %v376 = vadd.f32 %v38, %v346
  %v377 = vadd.f32 %v39, %v348
  %v378 = vadd.f32 %v40, %v351
  %v379 = vadd.f32 %v41, %v353
  %v380 = vadd.f32 %v42, %v356
  %v381 = vadd.f32 %v43, %v358
  %v382 = vadd.f32 %v44, %v361
  %v383 = vadd.f32 %v45, %v363
  %v384 = vadd.f32 %v46, %v366
  %v385 = vadd.f32 %v47, %v368
  %vm386 = vcmask 392192
  %387 = vst.msk [vmem:[#allocation2] sm:$0xff] %vm386, %v370
  %388 = vst.msk [vmem:[#allocation2 + $0x8] sm:$0xff] %vm386, %v371
  %389 = vst.msk [vmem:[#allocation2 + $0x10] sm:$0xff] %vm386, %v372
  %390 = vst.msk [vmem:[#allocation2 + $0x18] sm:$0xff] %vm386, %v373
  %391 = vst.msk [vmem:[#allocation2 + $0x20] sm:$0xff] %vm386, %v374
  %392 = vst.msk [vmem:[#allocation2 + $0x28] sm:$0xff] %vm386, %v375
  %393 = vst.msk [vmem:[#allocation2 + $0x30] sm:$0xff] %vm386, %v376
  %394 = vst.msk [vmem:[#allocation2 + $0x38] sm:$0xff] %vm386, %v377
  %395 = vst.msk [vmem:[#allocation2 + $0x40] sm:$0xff] %vm386, %v378
  %396 = vst.msk [vmem:[#allocation2 + $0x48] sm:$0xff] %vm386, %v379
  %397 = vst.msk [vmem:[#allocation2 + $0x50] sm:$0xff] %vm386, %v380
  %398 = vst.msk [vmem:[#allocation2 + $0x58] sm:$0xff] %vm386, %v381
  %399 = vst.msk [vmem:[#allocation2 + $0x60] sm:$0xff] %vm386, %v382
  %400 = vst.msk [vmem:[#allocation2 + $0x68] sm:$0xff] %vm386, %v383
  %401 = vst.msk [vmem:[#allocation2 + $0x70] sm:$0xff] %vm386, %v384
  %402 = vst.msk [vmem:[#allocation2 + $0x78] sm:$0xff] %vm386, %v385
  // Predicated region
  $region14: #{single_layer_image_gcn_forward.2} parent=0 // pred_check
    %p403 = pneg %p11
  $region15: #{single_layer_image_gcn_forward.2} parent=0 // pred_check_branch
    %405 = sbr.rel (%p403) target = $region17
  $region16: #{single_layer_image_gcn_forward.2} parent=0 // pred_region
    %v406 = vld [vmem:[#allocation2] sm:$0xff]
    %v407 = vld [vmem:[#allocation2 + $0x8] sm:$0xff]
    %v408 = vld [vmem:[#allocation2 + $0x10] sm:$0xff]
    %v409 = vld [vmem:[#allocation2 + $0x18] sm:$0xff]
    %v410 = vld [vmem:[#allocation2 + $0x20] sm:$0xff]
    %v411 = vld [vmem:[#allocation2 + $0x28] sm:$0xff]
    %v412 = vld [vmem:[#allocation2 + $0x30] sm:$0xff]
    %v413 = vld [vmem:[#allocation2 + $0x38] sm:$0xff]
    %v414 = vld [vmem:[#allocation2 + $0x40] sm:$0xff]
    %v415 = vld [vmem:[#allocation2 + $0x48] sm:$0xff]
    %v416 = vld [vmem:[#allocation2 + $0x50] sm:$0xff]
    %v417 = vld [vmem:[#allocation2 + $0x58] sm:$0xff]
    %v418 = vld [vmem:[#allocation2 + $0x60] sm:$0xff]
    %v419 = vld [vmem:[#allocation2 + $0x68] sm:$0xff]
    %v420 = vld [vmem:[#allocation2 + $0x70] sm:$0xff]
    %v421 = vld [vmem:[#allocation2 + $0x78] sm:$0xff]
    %v422 = vpack.c.bf16 %v406, %v406
    %v423 = vpack.c.bf16 %v407, %v407
    %v424 = vpack.c.bf16 %v408, %v408
    %v425 = vpack.c.bf16 %v409, %v409
    %v426 = vpack.c.bf16 %v410, %v410
    %v427 = vpack.c.bf16 %v411, %v411
    %v428 = vpack.c.bf16 %v412, %v412
    %v429 = vpack.c.bf16 %v413, %v413
    %v430 = vpack.c.bf16 %v414, %v414
    %v431 = vpack.c.bf16 %v415, %v415
    %v432 = vpack.c.bf16 %v416, %v416
    %v433 = vpack.c.bf16 %v417, %v417
    %v434 = vpack.c.bf16 %v418, %v418
    %v435 = vpack.c.bf16 %v419, %v419
    %v436 = vpack.c.bf16 %v420, %v420
    %v437 = vpack.c.bf16 %v421, %v421
    %vm438 = vcmask 388096
    %439 = vst.msk [vmem:[%s2] sm:$0xf] %vm438, %v422
    %440 = vst.msk [vmem:[%s2 + $0x4] sm:$0xf] %vm438, %v423
    %441 = vst.msk [vmem:[%s2 + $0x8] sm:$0xf] %vm438, %v424
    %442 = vst.msk [vmem:[%s2 + $0xc] sm:$0xf] %vm438, %v425
    %443 = vst.msk [vmem:[%s2 + $0x10] sm:$0xf] %vm438, %v426
    %444 = vst.msk [vmem:[%s2 + $0x14] sm:$0xf] %vm438, %v427
    %445 = vst.msk [vmem:[%s2 + $0x18] sm:$0xf] %vm438, %v428
    %446 = vst.msk [vmem:[%s2 + $0x1c] sm:$0xf] %vm438, %v429
    %447 = vst.msk [vmem:[%s2 + $0x20] sm:$0xf] %vm438, %v430
    %448 = vst.msk [vmem:[%s2 + $0x24] sm:$0xf] %vm438, %v431
    %449 = vst.msk [vmem:[%s2 + $0x28] sm:$0xf] %vm438, %v432
    %450 = vst.msk [vmem:[%s2 + $0x2c] sm:$0xf] %vm438, %v433
    %451 = vst.msk [vmem:[%s2 + $0x30] sm:$0xf] %vm438, %v434
    %452 = vst.msk [vmem:[%s2 + $0x34] sm:$0xf] %vm438, %v435
    %453 = vst.msk [vmem:[%s2 + $0x38] sm:$0xf] %vm438, %v436
    %454 = vst.msk [vmem:[%s2 + $0x3c] sm:$0xf] %vm438, %v437
  $region17: #{single_layer_image_gcn_forward.2} parent=0 // pred_fallthru
    _
  // Predicated region
  $region18: #{single_layer_image_gcn_forward.2} parent=0 // pred_check
    _
  $region19: #{single_layer_image_gcn_forward.2} parent=0 // pred_check_branch
    %456 = sbr.rel (0) target = $region21
  $region20: #{single_layer_image_gcn_forward.2} parent=0 // pred_region
    _
  $region21: #{single_layer_image_gcn_forward.2} parent=0 // pred_fallthru
    _
  // Predicated region
  $region22: #{single_layer_image_gcn_forward.2} parent=0 // pred_check
    _
  $region23: #{single_layer_image_gcn_forward.2} parent=0 // pred_check_branch
    %458 = sbr.rel (0) target = $region25
  $region24: #{single_layer_image_gcn_forward.2} parent=0 // pred_region
    _
  $region25: #{single_layer_image_gcn_forward.2} parent=0 // pred_fallthru
    _

// kernel: single_layer_image_gcn_forward.3
$region0: #{single_layer_image_gcn_forward.3}
  #allocation0 [shape = 'u32[]', space=smem, size = 0x4, offset = 0x4, fixed_abs, tag = 'smem constant byte address 0x4 - core index']
  #allocation1 [shape = 'u32[72,128]{1,0:T(1,128)}', space=vmem, size = 0x9000, scoped, tag = 'internal scratch']
  #allocation2 [shape = 'f32[24,16]{1,0:T(8,128)}', space=vmem, size = 0x3000, scoped, tag = 'scratch operand']
  %s0 = inlined_call_operand.vmem [shape: bf16[24,256], index: 0, kind: input, shape index: {}]
  %s1 = inlined_call_operand.vmem [shape: bf16[256,16], index: 1, kind: input, shape index: {}]
  %s2 = inlined_call_operand.vmem [shape: f32[24,16], index: 2, kind: input, shape index: {}]
  %s3 = inlined_call_operand.vmem [shape: f32[24,16], index: 3, kind: output, shape index: {}]
  %s4 = sld [smem:[#allocation0]]
  $region94: #{single_layer_image_gcn_forward.3} parent=0
    _
  %s6 = ssub.s32 1, %s4
  %s7 = scalar_select 0, %s6, %s4
  $region1: #{single_layer_image_gcn_forward.3} parent=0
    #allocation3 [shape = 'u8[12288]{0}', space=vmem, size = 0x3000, scoped, tag = 'input window, operand 0']
    loop: start=0, step=1, limit=4
    $region2: #{single_layer_image_gcn_forward.3} parent=1 // loop_pre_header
      _
    $region3: #{single_layer_image_gcn_forward.3} parent=1 // loop_header
      %s9 = sphi 0, %s13
      %p10 = scmp.ge.s32.totalorder %s9, 4
      %s16 = sphi 0, %s28
      %s17 = sphi 0, %s24
      %s18 = sphi 0, %s16
      %s19 = sphi 0, %s17
      %s20 = sphi 0, %s18
      %s21 = sphi 0, %s19
      %s33 = sphi 0, %s35
      %s36 = sphi 0, %s33
      %s37 = sphi 0, %s36
      %s53 = sphi 0, %s37
      %s59 = sphi 0, %s61
      %s62 = sphi 0, %s59
      %s63 = sphi 0, %s62
      %s79 = sphi 0, %s63
      %s85 = sphi 0, %s87
      %s88 = sphi 0, %s85
      %s89 = sphi 0, %s88
      %s105 = sphi 0, %s89
      %s111 = sphi 0, %s113
      %s114 = sphi 0, %s111
      %s115 = sphi 0, %s114
      %s131 = sphi 0, %s115
    $region4: #{single_layer_image_gcn_forward.3} parent=1 // loop_header_branch
      %12 = sbr.rel (%p10) target = $region8
    $region5: #{single_layer_image_gcn_forward.3} parent=1 // loop_body
      %s14 = ssub.s32 %s9, 1
      %s15 = ssub.s32 %s9, 2
      %s22 = sadd.s32 1, %s17
      %p23 = scmp.ge.s32.totalorder %s22, 2
      %s24 = scalar_select %p23, 0, %s22
      %s25 = sadd.s32 1, %s16
      %s26 = scalar_select %p23, %s25, %s16
      %p27 = scmp.ge.s32.totalorder %s26, 1
      %s28 = scalar_select %p27, 0, %s26
      %s29 = ssub.s32 %s16, %s28
      %s30 = ssub.s32 %s17, %s24
      %s31 = sor.u32 %s29, %s30
      %p32 = scmp.eq.s32.totalorder %s31, 0
      %s34 = sadd.s32 %s33, 1
      %s35 = scalar_select %p32, %s33, %s34
      %p38 = pneg %p32
      %p39 = scmp.eq.s32.totalorder %s9, 1
      %p40 = por %p38, %p39
      %p41 = scmp.ne.s32.totalorder %s33, %s36
      %p42 = scmp.eq.s32.totalorder %s9, 0
      %p43 = por %p41, %p42
      %p44 = scmp.ne.s32.totalorder %s33, %s36
      %p45 = scmp.eq.s32.totalorder %s14, 1
      %p46 = por %p44, %p45
      %p47 = scmp.ne.s32.totalorder %s36, %s37
      %p48 = scmp.eq.s32.totalorder %s14, 0
      %p49 = por %p47, %p48
      %p50 = scmp.ne.s32.totalorder %s36, %s37
      %p51 = scmp.eq.s32.totalorder %s15, 1
      %p52 = por %p50, %p51
      %p54 = scmp.ne.s32.totalorder %s37, %s53
      %p55 = scmp.eq.s32.totalorder %s15, 0
      %p56 = por %p54, %p55
      %s57 = ssub.s32 %s17, %s24
      %p58 = scmp.eq.s32.totalorder %s57, 0
      %s60 = sadd.s32 %s59, 1
      %s61 = scalar_select %p58, %s59, %s60
      %p64 = pneg %p58
      %p65 = scmp.eq.s32.totalorder %s9, 1
      %p66 = por %p64, %p65
      %p67 = scmp.ne.s32.totalorder %s59, %s62
      %p68 = scmp.eq.s32.totalorder %s9, 0
      %p69 = por %p67, %p68
      %p70 = scmp.ne.s32.totalorder %s59, %s62
      %p71 = scmp.eq.s32.totalorder %s14, 1
      %p72 = por %p70, %p71
      %p73 = scmp.ne.s32.totalorder %s62, %s63
      %p74 = scmp.eq.s32.totalorder %s14, 0
      %p75 = por %p73, %p74
      %p76 = scmp.ne.s32.totalorder %s62, %s63
      %p77 = scmp.eq.s32.totalorder %s15, 1
      %p78 = por %p76, %p77
      %p80 = scmp.ne.s32.totalorder %s63, %s79
      %p81 = scmp.eq.s32.totalorder %s15, 0
      %p82 = por %p80, %p81
      %s83 = ssub.s32 %s16, %s28
      %p84 = scmp.eq.s32.totalorder %s83, 0
      %s86 = sadd.s32 %s85, 1
      %s87 = scalar_select %p84, %s85, %s86
      %p90 = pneg %p84
      %p91 = scmp.eq.s32.totalorder %s9, 1
      %p92 = por %p90, %p91
      %p93 = scmp.ne.s32.totalorder %s85, %s88
      %p94 = scmp.eq.s32.totalorder %s9, 0
      %p95 = por %p93, %p94
      %p96 = scmp.ne.s32.totalorder %s85, %s88
      %p97 = scmp.eq.s32.totalorder %s14, 1
      %p98 = por %p96, %p97
      %p99 = scmp.ne.s32.totalorder %s88, %s89
      %p100 = scmp.eq.s32.totalorder %s14, 0
      %p101 = por %p99, %p100
      %p102 = scmp.ne.s32.totalorder %s88, %s89
      %p103 = scmp.eq.s32.totalorder %s15, 1
      %p104 = por %p102, %p103
      %p106 = scmp.ne.s32.totalorder %s89, %s105
      %p107 = scmp.eq.s32.totalorder %s15, 0
      %p108 = por %p106, %p107
      %s109 = ssub.s32 %s16, %s28
      %p110 = scmp.eq.s32.totalorder %s109, 0
      %s112 = sadd.s32 %s111, 1
      %s113 = scalar_select %p110, %s111, %s112
      %p116 = pneg %p110
      %p117 = scmp.eq.s32.totalorder %s9, 1
      %p118 = por %p116, %p117
      %p119 = scmp.ne.s32.totalorder %s111, %s114
      %p120 = scmp.eq.s32.totalorder %s9, 0
      %p121 = por %p119, %p120
      %p122 = scmp.ne.s32.totalorder %s111, %s114
      %p123 = scmp.eq.s32.totalorder %s14, 1
      %p124 = por %p122, %p123
      %p125 = scmp.ne.s32.totalorder %s114, %s115
      %p126 = scmp.eq.s32.totalorder %s14, 0
      %p127 = por %p125, %p126
      %p128 = scmp.ne.s32.totalorder %s114, %s115
      %p129 = scmp.eq.s32.totalorder %s15, 1
      %p130 = por %p128, %p129
      %p132 = scmp.ne.s32.totalorder %s115, %s131
      %p133 = scmp.eq.s32.totalorder %s15, 0
      %p134 = por %p132, %p133
      %p135 = scmp.le.s32.totalorder 1, %s9
      %p136 = scmp.lt.s32.totalorder %s9, 3
      %p137 = pnand %p135, %p136
      %p138 = pneg %p137
      // Predicated region
      $region9: #{single_layer_image_gcn_forward.3} parent=5 // pred_check
        _
      $region10: #{single_layer_image_gcn_forward.3} parent=5 // pred_check_branch
        %140 = sbr.rel (%p137) target = $region12
      $region11: #{single_layer_image_gcn_forward.3} parent=5 // pred_region
        %s141 = ssub.s32 %s9, 1
        // Predicated region
        $region13: #{single_layer_image_gcn_forward.3} parent=11 // pred_check
          %p142 = pneg %p101
        $region14: #{single_layer_image_gcn_forward.3} parent=11 // pred_check_branch
          %144 = sbr.rel (%p142) target = $region16
        $region15: #{single_layer_image_gcn_forward.3} parent=11 // pred_region
          %s145 = smul.u32 3, %s18
          %p146 = scmp.lt.s32.totalorder %s145, 2
          %s147 = scalar_select %p146, %s145, 2
          %s148 = smul.addr %s147, 8
          %s149 = scalar_lea.vmem %s2, %s148
          %s150 = smul.u32 3, %s18
        $region16: #{single_layer_image_gcn_forward.3} parent=11 // pred_fallthru
          _
      $region12: #{single_layer_image_gcn_forward.3} parent=5 // pred_fallthru
        _
      %p151 = scmp.lt.s32.totalorder %s9, 2
      // Predicated region
      $region17: #{single_layer_image_gcn_forward.3} parent=5 // pred_check
        %p152 = pneg %p151
      $region18: #{single_layer_image_gcn_forward.3} parent=5 // pred_check_branch
        %154 = sbr.rel (%p152) target = $region20
      $region19: #{single_layer_image_gcn_forward.3} parent=5 // pred_region
        // Predicated region
        $region21: #{single_layer_image_gcn_forward.3} parent=19 // pred_check
          %p155 = pneg %p43
        $region22: #{single_layer_image_gcn_forward.3} parent=19 // pred_check_branch
          %157 = sbr.rel (%p155) target = $region24
        $region23: #{single_layer_image_gcn_forward.3} parent=19 // pred_region
          %s158 = sand.u32 %s33, 1
          %s159 = sand.u32 %s33, 1
          %s160 = smul.addr %s159, 12
          %s161 = scalar_lea.vmem [#allocation3], %s160
          %s162 = smul.u32 3, %s16
          %s163 = smul.addr %s162, 2
          %s164 = sadd.s32 %s17, %s163
          %s165 = smul.addr %s164, 4
          %s166 = scalar_lea.vmem %s0, %s165
          // Predicated region
          $region25: #{single_layer_image_gcn_forward.3} parent=23 // pred_check
            _
          $region26: #{single_layer_image_gcn_forward.3} parent=23 // pred_check_branch
            %168 = sbr.rel (0) target = $region28
          $region27: #{single_layer_image_gcn_forward.3} parent=23 // pred_region
            // Predicated region
            $region29: #{single_layer_image_gcn_forward.3} parent=27 // pred_check
              _
            $region30: #{single_layer_image_gcn_forward.3} parent=27 // pred_check_branch
              %170 = sbr.rel target = $region32
            $region31: #{single_layer_image_gcn_forward.3} parent=27 // pred_region
              // Predicated region
              $region44: #{single_layer_image_gcn_forward.3} parent=31 // pred_check
                _
              $region45: #{single_layer_image_gcn_forward.3} parent=31 // pred_check_branch
                %190 = sbr.rel (0) target = $region47
              $region46: #{single_layer_image_gcn_forward.3} parent=31 // pred_region
                loop: start=0, step=1, limit=1
                $region48: #{single_layer_image_gcn_forward.3} parent=46 // loop_pre_header
                  _
                $region49: #{single_layer_image_gcn_forward.3} parent=46 // loop_header
                  %s192 = sphi 0, %s196
                  %p193 = scmp.ge.s32.totalorder %s192, 1
                  %s197 = sphi %s166, %s166
                  %s198 = sphi %s161, %s161
                $region50: #{single_layer_image_gcn_forward.3} parent=46 // loop_header_branch
                  %195 = sbr.rel (%p193) target = $region54
                $region51: #{single_layer_image_gcn_forward.3} parent=46 // loop_body
                  _
                $region52: #{single_layer_image_gcn_forward.3} parent=46 // loop_footer
                  %s196 = sadd.s32 1, %s192
                $region53: #{single_layer_image_gcn_forward.3} parent=46 // loop_footer_branch
                  %191 = sbr.rel target = $region49
                $region54: #{single_layer_image_gcn_forward.3} parent=46 // loop_exit
                  _
                %s200 = ssub.s32 16, 1
                loop: start=0, step=1, limit=1
                $region55: #{single_layer_image_gcn_forward.3} parent=46 // loop_pre_header
                  _
                $region56: #{single_layer_image_gcn_forward.3} parent=46 // loop_header
                  %s202 = sphi 0, %s206
                  %p203 = scmp.ge.s32.totalorder %s202, 1
                  %s207 = sphi %s166, %s166
                  %s208 = sphi %s161, %s161
                $region57: #{single_layer_image_gcn_forward.3} parent=46 // loop_header_branch
                  %205 = sbr.rel (%p203) target = $region61
                $region58: #{single_layer_image_gcn_forward.3} parent=46 // loop_body
                  %v209 = vld [vmem:[%s207] sm:%s200]
                  %210 = vst [vmem:[%s208] sm:%s200] %v209
                  %v211 = vld [vmem:[%s207 + $0x8] sm:%s200]
                  %212 = vst [vmem:[%s208 + $0x4] sm:%s200] %v211
                  %v213 = vld [vmem:[%s207 + $0x10] sm:%s200]
                  %214 = vst [vmem:[%s208 + $0x8] sm:%s200] %v213
                $region59: #{single_layer_image_gcn_forward.3} parent=46 // loop_footer
                  %s206 = sadd.s32 1, %s202
                $region60: #{single_layer_image_gcn_forward.3} parent=46 // loop_footer_branch
                  %201 = sbr.rel target = $region56
                $region61: #{single_layer_image_gcn_forward.3} parent=46 // loop_exit
                  _
              $region47: #{single_layer_image_gcn_forward.3} parent=31 // pred_fallthru
                _
            $region32: #{single_layer_image_gcn_forward.3} parent=27 // pred_fallthru
              _
            // Predicated region
            $region33: #{single_layer_image_gcn_forward.3} parent=27 // pred_check
              _
            $region34: #{single_layer_image_gcn_forward.3} parent=27 // pred_check_branch
              %172 = sbr.rel (0) target = $region36
            $region35: #{single_layer_image_gcn_forward.3} parent=27 // pred_region
              %s174 = ssub.s32 16, 1
              loop: start=0, step=1, limit=1
              $region37: #{single_layer_image_gcn_forward.3} parent=35 // loop_pre_header
                _
              $region38: #{single_layer_image_gcn_forward.3} parent=35 // loop_header
                %s176 = sphi 0, %s180
                %p177 = scmp.ge.s32.totalorder %s176, 1
                %s181 = sphi %s166, %s166
                %s182 = sphi %s161, %s161
              $region39: #{single_layer_image_gcn_forward.3} parent=35 // loop_header_branch
                %179 = sbr.rel (%p177) target = $region43
              $region40: #{single_layer_image_gcn_forward.3} parent=35 // loop_body
                %v183 = vld [vmem:[%s181] sm:%s174]
                %184 = vst [vmem:[%s182] sm:%s174] %v183
                %v185 = vld [vmem:[%s181 + $0x8] sm:%s174]
                %186 = vst [vmem:[%s182 + $0x4] sm:%s174] %v185
                %v187 = vld [vmem:[%s181 + $0x10] sm:%s174]
                %188 = vst [vmem:[%s182 + $0x8] sm:%s174] %v187
              $region41: #{single_layer_image_gcn_forward.3} parent=35 // loop_footer
                %s180 = sadd.s32 1, %s176
              $region42: #{single_layer_image_gcn_forward.3} parent=35 // loop_footer_branch
                %175 = sbr.rel target = $region38
              $region43: #{single_layer_image_gcn_forward.3} parent=35 // loop_exit
                _
            $region36: #{single_layer_image_gcn_forward.3} parent=27 // pred_fallthru
              _
          $region28: #{single_layer_image_gcn_forward.3} parent=23 // pred_fallthru
            _
          %215 = vnop
        $region24: #{single_layer_image_gcn_forward.3} parent=19 // pred_fallthru
          _
        // Predicated region
        $region62: #{single_layer_image_gcn_forward.3} parent=19 // pred_check
          %p216 = pneg %p69
        $region63: #{single_layer_image_gcn_forward.3} parent=19 // pred_check_branch
          %218 = sbr.rel (%p216) target = $region65
        $region64: #{single_layer_image_gcn_forward.3} parent=19 // pred_region
          %s219 = smul.u32 16, %s17
          %p220 = scmp.lt.s32.totalorder %s219, 31
          %s221 = scalar_select %p220, %s219, 31
          %s222 = smul.addr %s221, 4
          %s223 = scalar_lea.vmem %s1, %s222
          %s224 = smul.u32 16, %s17
        $region65: #{single_layer_image_gcn_forward.3} parent=19 // pred_fallthru
          _
      $region20: #{single_layer_image_gcn_forward.3} parent=5 // pred_fallthru
        _
      %p225 = scmp.le.s32.totalorder 1, %s9
      %p226 = scmp.lt.s32.totalorder %s9, 3
      %p227 = pnand %p225, %p226
      %p228 = pneg %p227
      // Predicated region
      $region66: #{single_layer_image_gcn_forward.3} parent=5 // pred_check
        _
      $region67: #{single_layer_image_gcn_forward.3} parent=5 // pred_check_branch
        %230 = sbr.rel (%p227) target = $region69
      $region68: #{single_layer_image_gcn_forward.3} parent=5 // pred_region
        %s231 = ssub.s32 %s9, 1
        %s232 = sand.u32 %s36, 1
        %s233 = sand.u32 %s36, 1
        %s234 = smul.addr %s233, 12
        %s235 = scalar_lea.vmem [#allocation3], %s234
        // Predicated region
        $region70: #{single_layer_image_gcn_forward.3} parent=68 // pred_check
          %p236 = pneg %p49
        $region71: #{single_layer_image_gcn_forward.3} parent=68 // pred_check_branch
          %238 = sbr.rel (%p236) target = $region73
        $region72: #{single_layer_image_gcn_forward.3} parent=68 // pred_region
          _
        $region73: #{single_layer_image_gcn_forward.3} parent=68 // pred_fallthru
          _
        %s239 = sand.u32 %s36, 1
        %s240 = sand.u32 %s36, 1
        %s241 = smul.addr %s240, 12
        %s242 = scalar_lea.vmem [#allocation3], %s241
        %p243 = pneg %p49
        %p244 = pneg %p46
        %s245 = smul.u32 16, %s19
        %p246 = scmp.lt.s32.totalorder %s245, 31
        %s247 = scalar_select %p246, %s245, 31
        %s248 = smul.addr %s247, 4
        %s249 = scalar_lea.vmem %s1, %s248
        %p250 = pneg %p75
        %p251 = pneg %p72
        %s252 = smul.u32 3, %s18
        %p253 = scmp.lt.s32.totalorder %s252, 2
        %s254 = scalar_select %p253, %s252, 2
        %s255 = smul.addr %s254, 8
        %s256 = scalar_lea.vmem %s2, %s255
        %p257 = pneg %p101
        %p258 = pneg %p98
        %p259 = pneg %p127
        %p260 = pneg %p124
        %s261 = smul.u32 3, %s18
        %p262 = scmp.lt.s32.totalorder %s261, 2
        %s263 = scalar_select %p262, %s261, 2
        %s264 = smul.addr %s263, 8
        %s265 = scalar_lea.vmem %s3, %s264
        %s266 = smul.u32 3, %s18
        %s267 = smul.u32 16, %s19
        %p268 = scmp.lt.s32.totalorder %s267, 31
        %s269 = scalar_select %p268, %s267, 31
        %s270 = smul.addr %s269, 4
        %s271 = scalar_lea.vmem %s1, %s270
        %s272 = smul.u32 16, %s19
        %s273 = smul.u32 3, %s18
        %p274 = scmp.lt.s32.totalorder %s273, 2
        %s275 = scalar_select %p274, %s273, 2
        %s276 = smul.addr %s275, 8
        %s277 = scalar_lea.vmem %s2, %s276
        %s278 = smul.u32 3, %s18
        %s279 = smul.u32 3, %s18
        %p280 = scmp.lt.s32.totalorder %s279, 2
        %s281 = scalar_select %p280, %s279, 2
        %s282 = smul.addr %s281, 8
        %s283 = scalar_lea.vmem %s3, %s282
        %s284 = smul.u32 3, %s18
        %p285 = scmp.eq.s32.totalorder %s19, 0
        // Predicated region
        $region74: #{single_layer_image_gcn_forward.3} parent=68 // pred_check
          %p286 = pneg %p285
        $region75: #{single_layer_image_gcn_forward.3} parent=68 // pred_check_branch
          %288 = sbr.rel (%p286) target = $region77
        $region76: #{single_layer_image_gcn_forward.3} parent=68 // pred_region
          %v289 = vld [vmem:[%s277] sm:$0xff]
          %v290 = vld [vmem:[%s277 + $0x8] sm:$0xff]
          %v291 = vld [vmem:[%s277 + $0x10] sm:$0xff]
          %vm292 = vcmask 130048
          %293 = vst.msk [vmem:[#allocation2] sm:$0xff] %vm292, %v289
          %294 = vst.msk [vmem:[#allocation2 + $0x8] sm:$0xff] %vm292, %v290
          %295 = vst.msk [vmem:[#allocation2 + $0x10] sm:$0xff] %vm292, %v291
        $region77: #{single_layer_image_gcn_forward.3} parent=68 // pred_fallthru
          _
        %v296 = vld [vmem:[#allocation2] sm:$0xff]
        %v297 = vld [vmem:[#allocation2 + $0x8] sm:$0xff]
        %v298 = vld [vmem:[#allocation2 + $0x10] sm:$0xff]
        %v299 = vld [vmem:[%s235] sm:$0xf]
        %v300 = vld [vmem:[%s235 + $0x4] sm:$0xf]
        %v301 = vld [vmem:[%s235 + $0x8] sm:$0xf]
        %v302 = vld [vmem:[%s271] sm:$0xf]
        %v303 = vld [vmem:[%s271 + $0x4] sm:$0xf]
        %v304 = vld [vmem:[%s271 + $0x8] sm:$0xf]
        %v305 = vld [vmem:[%s271 + $0xc] sm:$0xf]
        %v306 = vld [vmem:[%s271 + $0x10] sm:$0xf]
        %v307 = vld [vmem:[%s271 + $0x14] sm:$0xf]
        %v308 = vld [vmem:[%s271 + $0x18] sm:$0xf]
        %v309 = vld [vmem:[%s271 + $0x1c] sm:$0xf]
        %v310 = vld [vmem:[%s271 + $0x20] sm:$0xf]
        %v311 = vld [vmem:[%s271 + $0x24] sm:$0xf]
        %v312 = vld [vmem:[%s271 + $0x28] sm:$0xf]
        %v313 = vld [vmem:[%s271 + $0x2c] sm:$0xf]
        %v314 = vld [vmem:[%s271 + $0x30] sm:$0xf]
        %v315 = vld [vmem:[%s271 + $0x34] sm:$0xf]
        %v316 = vld [vmem:[%s271 + $0x38] sm:$0xf]
        %v317 = vld [vmem:[%s271 + $0x3c] sm:$0xf]
        %v321 = vunpack.c.l.b16 %v299
        %v322 = vunpack.c.l.b16 %v300
        %v323 = vunpack.c.l.b16 %v301
        %v324 = vpack.c.b16 %v322, %v321
        %v325 = vpack.c.b16 %v323, %v323
        %v344 = vunpack.c.l.b16 %v302
        %v345 = vunpack.c.l.b16 %v303
        %v346 = vunpack.c.l.b16 %v304
        %v347 = vunpack.c.l.b16 %v305
        %v348 = vunpack.c.l.b16 %v306
        %v349 = vunpack.c.l.b16 %v307
        %v350 = vunpack.c.l.b16 %v308
        %v351 = vunpack.c.l.b16 %v309
        %v352 = vunpack.c.l.b16 %v310
        %v353 = vunpack.c.l.b16 %v311
        %v354 = vunpack.c.l.b16 %v312
        %v355 = vunpack.c.l.b16 %v313
        %v356 = vunpack.c.l.b16 %v314
        %v357 = vunpack.c.l.b16 %v315
        %v358 = vunpack.c.l.b16 %v316
        %v359 = vunpack.c.l.b16 %v317
        %v360 = vpack.c.b16 %v345, %v344
        %v361 = vpack.c.b16 %v347, %v346
        %v362 = vpack.c.b16 %v349, %v348
        %v363 = vpack.c.b16 %v351, %v350
        %v364 = vpack.c.b16 %v353, %v352
        %v365 = vpack.c.b16 %v355, %v354
        %v366 = vpack.c.b16 %v357, %v356
        %v367 = vpack.c.b16 %v359, %v358
        %376 = vmatpush.bf16.msra.mxu0 %v367
        %377 = vmatpush.bf16.msra.mxu0 %v366
        %378 = vmatpush.bf16.msra.mxu0 %v365
        %379 = vmatpush.bf16.msra.mxu0 %v364
        %380 = vmatpush.bf16.msra.mxu0 %v363
        %381 = vmatpush.bf16.msra.mxu0 %v362
        %382 = vmatpush.bf16.msra.mxu0 %v361
        %383 = vmatpush.bf16.msra.mxu0 %v360
        %384 = vmatmul.bf16.gmra.mxu0 %v324
        %v385 = vpop.f32.mrf.mxu0
        %v386 = vadd.f32 0.0, %v385
        %v387 = vpop.f32.mrf.mxu0
        %v388 = vadd.f32 0.0, %v387
        %389 = vmatmul.bf16.gmra.mxu0 %v325
        %v390 = vpop.f32.mrf.mxu0
        %v391 = vadd.f32 0.0, %v390
        %v392 = vpop.f32.mrf.mxu0
        %393 = vdwg.mxu0
        %v394 = vadd.f32 %v296, %v386
        %v395 = vadd.f32 %v297, %v388
        %v396 = vadd.f32 %v298, %v391
        %vm397 = vcmask 130048
        %398 = vst.msk [vmem:[#allocation2] sm:$0xff] %vm397, %v394
        %399 = vst.msk [vmem:[#allocation2 + $0x8] sm:$0xff] %vm397, %v395
        %400 = vst.msk [vmem:[#allocation2 + $0x10] sm:$0xff] %vm397, %v396
        %p401 = scmp.eq.s32.totalorder %s19, 1
        // Predicated region
        $region78: #{single_layer_image_gcn_forward.3} parent=68 // pred_check
          %p402 = pneg %p401
        $region79: #{single_layer_image_gcn_forward.3} parent=68 // pred_check_branch
          %404 = sbr.rel (%p402) target = $region81
        $region80: #{single_layer_image_gcn_forward.3} parent=68 // pred_region
          %v405 = vld [vmem:[#allocation2] sm:$0xff]
          %v406 = vld [vmem:[#allocation2 + $0x8] sm:$0xff]
          %v407 = vld [vmem:[#allocation2 + $0x10] sm:$0xff]
          %408 = vst.msk [vmem:[%s283] sm:$0xff] %vm397, %v405
          %409 = vst.msk [vmem:[%s283 + $0x8] sm:$0xff] %vm397, %v406
          %410 = vst.msk [vmem:[%s283 + $0x10] sm:$0xff] %vm397, %v407
        $region81: #{single_layer_image_gcn_forward.3} parent=68 // pred_fallthru
          _
        %s411 = smul.u32 3, %s18
        %p412 = scmp.lt.s32.totalorder %s411, 2
        %s413 = scalar_select %p412, %s411, 2
        %s414 = smul.addr %s413, 8
        %s415 = scalar_lea.vmem %s3, %s414
        // Predicated region
        $region82: #{single_layer_image_gcn_forward.3} parent=68 // pred_check
          %p416 = pneg %p124
        $region83: #{single_layer_image_gcn_forward.3} parent=68 // pred_check_branch
          %418 = sbr.rel (%p416) target = $region85
        $region84: #{single_layer_image_gcn_forward.3} parent=68 // pred_region
          %s419 = smul.u32 3, %s18
        $region85: #{single_layer_image_gcn_forward.3} parent=68 // pred_fallthru
          _
        // Predicated region
        $region86: #{single_layer_image_gcn_forward.3} parent=68 // pred_check
          %p420 = pneg %p124
        $region87: #{single_layer_image_gcn_forward.3} parent=68 // pred_check_branch
          %422 = sbr.rel (%p420) target = $region89
        $region88: #{single_layer_image_gcn_forward.3} parent=68 // pred_region
          %s423 = smul.u32 3, %s18
          %p424 = scmp.lt.s32.totalorder %s423, 2
          %s425 = scalar_select %p424, %s423, 2
          %s426 = smul.addr %s425, 8
          %s427 = scalar_lea.vmem %s3, %s426
        $region89: #{single_layer_image_gcn_forward.3} parent=68 // pred_fallthru
          _
      $region69: #{single_layer_image_gcn_forward.3} parent=5 // pred_fallthru
        _
      %p428 = scmp.le.s32.totalorder 2, %s9
      // Predicated region
      $region90: #{single_layer_image_gcn_forward.3} parent=5 // pred_check
        %p429 = pneg %p428
      $region91: #{single_layer_image_gcn_forward.3} parent=5 // pred_check_branch
        %431 = sbr.rel (%p429) target = $region93
      $region92: #{single_layer_image_gcn_forward.3} parent=5 // pred_region
        %s432 = ssub.s32 %s9, 2
      $region93: #{single_layer_image_gcn_forward.3} parent=5 // pred_fallthru
        _
    $region6: #{single_layer_image_gcn_forward.3} parent=1 // loop_footer
      %s13 = sadd.s32 1, %s9
    $region7: #{single_layer_image_gcn_forward.3} parent=1 // loop_footer_branch
      %8 = sbr.rel target = $region3
    $region8: #{single_layer_image_gcn_forward.3} parent=1 // loop_exit
      _

</llo_original>
